<compile_context>
chip_gen: v7x
topology: tpu7x:2x2x1
jax: 0.10.0
libtpu: 0.0.40
codegen_flags: <defaults>
</compile_context>

<pallas_src>
import functools
import math

import jax
import jax.numpy as jnp
from jax.experimental import pallas as pl
from jax.experimental.pallas import tpu as pltpu

# ----- config (small, deterministic) -----
B = 2          # batch
S = 8          # sequence length
H = 4          # num_attention_heads
DH = 8         # attention_head_size
D = H * DH     # hidden_size = all_head_size = 32


def _attn_kernel(h_ref, mask_ref, w_ref, b_ref, o_ref, *, num_heads):
    # h_ref:    (B, S, D)    bf16 hidden states
    # mask_ref: (B, 1, S)    f32 HF additive mask (0 keep, -1e4 masked)
    # w_ref:    (D, 3*D)     bf16 packed [Wq/sqrt(DH) | Wk | Wv]
    # b_ref:    (1, 3*D)     f32 packed  [bq/sqrt(DH) | bk | bv]
    # o_ref:    (B, S, D)    f32 context_layer output
    Bn, Sn, Dn = h_ref.shape
    Hn = num_heads
    DHn = Dn // Hn

    # ---- fused QKV projection: one lane-dense (B*S, D) x (D, 3D) bf16 MXU pass ----
    h2 = h_ref[...].reshape(Bn * Sn, Dn)                              # major-dim merge only
    qkv = jnp.dot(h2, w_ref[...], preferred_element_type=jnp.float32)  # (B*S, 3D) f32
    qkv = (qkv + b_ref[...]).astype(jnp.bfloat16)                      # bias in f32, bf16 for MXU reuse
    qkv = qkv.reshape(Bn, Sn, 3 * Dn)                                  # major-dim split only

    mask = mask_ref[...]                                               # (B, 1, S) f32

    # ---- per-head attention; heads are static lane slices of the packed QKV ----
    # TODO(synk): at real ELECTRA shapes replace this Python loop with a
    # ("parallel","parallel","arbitrary") grid over (batch*head, q-tile, kv-tile)
    # and flash-style online softmax; the loop is only appropriate at toy size.
    for h in range(Hn):
        q = qkv[:, :, h * DHn:(h + 1) * DHn]                           # (B, S, DH) bf16
        k = qkv[:, :, Dn + h * DHn:Dn + (h + 1) * DHn]
        v = qkv[:, :, 2 * Dn + h * DHn:2 * Dn + (h + 1) * DHn]

        # 1/sqrt(DH) already folded into Wq / bq by the wrapper.
        s = jnp.einsum('bqd,bkd->bqk', q, k,
                       preferred_element_type=jnp.float32)             # (B, S, S) f32
        s = s + mask                                                   # broadcast over query rows

        # softmax over keys — f32 throughout, exact divide.
        m = jnp.max(s, axis=-1, keepdims=True)
        e = jnp.exp(s - m)
        p = e / jnp.sum(e, axis=-1, keepdims=True)
        # attention-probs dropout: identity in eval mode

        ctx = jnp.einsum('bqk,bkd->bqd', p.astype(jnp.bfloat16), v,
                         preferred_element_type=jnp.float32)           # (B, S, DH) f32
        o_ref[:, :, h * DHn:(h + 1) * DHn] = ctx.astype(o_ref.dtype)


def electra_self_attention(hidden_states, attention_mask,
                           wq, bq, wk, bk, wv, bv, *, num_heads):
    """hidden_states: (B, S, D) f32; attention_mask: (B, S) additive f32.
    wq/wk/wv are (D_in, D_out) (already transposed vs. torch Linear.weight);
    bq/bk/bv are (D,)."""
    Bn, Sn, Dn = hidden_states.shape
    dh = Dn // num_heads
    scale = 1.0 / math.sqrt(dh)

    # --- wrapper-side packing (free weight prep, outside the kernel) ---
    # One packed [Wq*scale | Wk | Wv] weight and bias; scale folded into Q.
    w_packed = jnp.concatenate([wq * scale, wk, wv], axis=1).astype(jnp.bfloat16)   # (D, 3D)
    b_packed = jnp.concatenate([bq * scale, bk, bv])[None, :].astype(jnp.float32)   # (1, 3D)
    mask = attention_mask[:, None, :].astype(jnp.float32)                           # (B, 1, S)

    kernel = functools.partial(_attn_kernel, num_heads=num_heads)
    vmem = pl.BlockSpec(memory_space=pltpu.MemorySpace.VMEM)
    return pl.pallas_call(
        kernel,
        out_shape=jax.ShapeDtypeStruct((Bn, Sn, Dn), jnp.float32),
        in_specs=[vmem, vmem, vmem, vmem],
        out_specs=vmem,
    )(hidden_states.astype(jnp.bfloat16), mask, w_packed, b_packed)


def _reference_f32(hidden_states, attention_mask, wq, bq, wk, bk, wv, bv):
    # plain-JAX f32 reference matching the PyTorch forward exactly
    q = hidden_states @ wq + bq
    k = hidden_states @ wk + bk
    v = hidden_states @ wv + bv

    def split(x):  # (B, S, D) -> (B, H, S, DH)
        return x.reshape(B, S, H, DH).transpose(0, 2, 1, 3)

    qh, kh, vh = split(q), split(k), split(v)
    scores = jnp.einsum('bhqd,bhkd->bhqk', qh, kh) / math.sqrt(DH)
    scores = scores + attention_mask[:, None, None, :]
    probs = jax.nn.softmax(scores, axis=-1)
    ctx = jnp.einsum('bhqk,bhkd->bhqd', probs, vh)
    return ctx.transpose(0, 2, 1, 3).reshape(B, S, D)


def _reference_bf16_ops(hidden_states, attention_mask, wq, bq, wk, bk, wv, bv):
    # Mirrors the kernel's bf16 MXU-operand rounding points (f32 accumulation,
    # f32 softmax) so the kernel's own math can be checked at a tight tolerance.
    f32 = jnp.float32
    bf = lambda x: x.astype(jnp.bfloat16).astype(f32)
    scale = 1.0 / math.sqrt(DH)

    hb = bf(hidden_states)
    w_packed = bf(jnp.concatenate([wq * scale, wk, wv], axis=1))
    b_packed = jnp.concatenate([bq * scale, bk, bv]).astype(f32)
    qkv = bf(hb.reshape(B * S, D) @ w_packed + b_packed).reshape(B, S, 3 * D)

    out = jnp.zeros((B, S, D), f32)
    for h in range(H):
        q = qkv[:, :, h * DH:(h + 1) * DH]
        k = qkv[:, :, D + h * DH:D + (h + 1) * DH]
        v = qkv[:, :, 2 * D + h * DH:2 * D + (h + 1) * DH]
        s = jnp.einsum('bqd,bkd->bqk', q, k) + attention_mask[:, None, :]
        p = jax.nn.softmax(s, axis=-1)
        ctx = jnp.einsum('bqk,bkd->bqd', bf(p), v)
        out = out.at[:, :, h * DH:(h + 1) * DH].set(ctx)
    return out


if __name__ == "__main__":
    key = jax.random.PRNGKey(0)
    k_h, k_wq, k_wk, k_wv, k_bq, k_bk, k_bv = jax.random.split(key, 7)

    hidden_states = jax.random.normal(k_h, (B, S, D), dtype=jnp.float32)

    # deterministic parameter init (nn.Linear-like scale); stored pre-transposed (in, out)
    lim = 1.0 / math.sqrt(D)
    wq = jax.random.uniform(k_wq, (D, D), jnp.float32, -lim, lim)
    wk = jax.random.uniform(k_wk, (D, D), jnp.float32, -lim, lim)
    wv = jax.random.uniform(k_wv, (D, D), jnp.float32, -lim, lim)
    bq = jax.random.uniform(k_bq, (D,), jnp.float32, -lim, lim)
    bk = jax.random.uniform(k_bk, (D,), jnp.float32, -lim, lim)
    bv = jax.random.uniform(k_bv, (D,), jnp.float32, -lim, lim)

    # HF-style additive attention mask: 0 keep, -10000 masked (mask last 2 keys of batch 1)
    keep = jnp.ones((B, S), dtype=jnp.float32).at[1, -2:].set(0.0)
    attention_mask = (1.0 - keep) * -10000.0

    out = electra_self_attention(hidden_states, attention_mask,
                                 wq, bq, wk, bk, wv, bv, num_heads=H)
    out = jax.block_until_ready(out)

    # 1) Tight check vs a reference that mirrors the kernel's bf16 MXU-operand
    #    rounding points: verifies the kernel math (exact softmax divide, bias,
    #    mask, scale folding) itself is correct.
    ref_matched = _reference_bf16_ops(hidden_states, attention_mask,
                                      wq, bq, wk, bk, wv, bv)
    assert jnp.allclose(out, ref_matched, atol=2e-3, rtol=2e-3), \
        "mismatch vs precision-matched reference"

    # 2) Check vs the exact f32 module semantics; tolerance reflects only the
    #    intentional bf16 MXU-operand rounding (f32 accumulation everywhere).
    ref = _reference_f32(hidden_states, attention_mask, wq, bq, wk, bk, wv, bv)
    assert jnp.allclose(out, ref, atol=2e-2, rtol=2e-2), \
        "mismatch vs f32 module reference"

    print("KERNEL_OK")
</pallas_src>

<mosaic_0001>
module attributes {stable_mosaic.version = 11 : i64} {
  func.func @_attn_kernel(%arg0: memref<2x8x32xbf16, #tpu.memory_space<vmem>>, %arg1: memref<2x1x8xf32, #tpu.memory_space<vmem>>, %arg2: memref<32x96xbf16, #tpu.memory_space<vmem>>, %arg3: memref<1x96xf32, #tpu.memory_space<vmem>>, %arg4: memref<2x8x32xf32, #tpu.memory_space<vmem>>) attributes {dimension_semantics = [], scalar_prefetch = 0 : i64, scratch_operands = 0 : i64, tpu.core_type = #tpu.core_type<tc>} {
    %c0 = arith.constant 0 : index
    %c0_0 = arith.constant 0 : index
    %c0_1 = arith.constant 0 : index
    %0 = vector.load %arg0[%c0, %c0_0, %c0_1] : memref<2x8x32xbf16, #tpu.memory_space<vmem>>, vector<2x8x32xbf16>
    %1 = vector.shape_cast %0 : vector<2x8x32xbf16> to vector<16x32xbf16>
    %c0_2 = arith.constant 0 : index
    %c0_3 = arith.constant 0 : index
    %2 = vector.load %arg2[%c0_2, %c0_3] : memref<32x96xbf16, #tpu.memory_space<vmem>>, vector<32x96xbf16>
    %cst = arith.constant dense<0.000000e+00> : vector<16x96xf32>
    %3 = tpu.matmul %1, %2, %cst {dimension_numbers = #tpu.dot_dimension_numbers<[1], [0], [0], [1], [0, 0, 1, 1], [], []>} : vector<16x32xbf16>, vector<32x96xbf16>, vector<16x96xf32> -> vector<16x96xf32>
    %c0_4 = arith.constant 0 : index
    %c0_5 = arith.constant 0 : index
    %4 = vector.load %arg3[%c0_4, %c0_5] : memref<1x96xf32, #tpu.memory_space<vmem>>, vector<1x96xf32>
    %5 = vector.broadcast %4 : vector<1x96xf32> to vector<16x96xf32>
    %6 = arith.addf %3, %5 : vector<16x96xf32>
    %7 = arith.truncf %6 : vector<16x96xf32> to vector<16x96xbf16>
    %8 = vector.shape_cast %7 : vector<16x96xbf16> to vector<2x8x96xbf16>
    %c0_6 = arith.constant 0 : index
    %c0_7 = arith.constant 0 : index
    %c0_8 = arith.constant 0 : index
    %9 = vector.load %arg1[%c0_6, %c0_7, %c0_8] : memref<2x1x8xf32, #tpu.memory_space<vmem>>, vector<2x1x8xf32>
    %10 = vector.extract_strided_slice %8 {offsets = [0, 0, 0], sizes = [2, 8, 8], strides = [1, 1, 1]} : vector<2x8x96xbf16> to vector<2x8x8xbf16>
    %11 = vector.extract_strided_slice %8 {offsets = [0, 0, 32], sizes = [2, 8, 8], strides = [1, 1, 1]} : vector<2x8x96xbf16> to vector<2x8x8xbf16>
    %12 = vector.extract_strided_slice %8 {offsets = [0, 0, 64], sizes = [2, 8, 8], strides = [1, 1, 1]} : vector<2x8x96xbf16> to vector<2x8x8xbf16>
    "tpu.trace_start"() <{level = 10 : i32, message = "bqd,bkd->bqk"}> : () -> ()
    %cst_9 = arith.constant dense<0.000000e+00> : vector<2x8x8xf32>
    %13 = tpu.matmul %10, %11, %cst_9 {dimension_numbers = #tpu.dot_dimension_numbers<[2], [2], [1], [1], [0, 0, 0, 1, 1, 1], [0], [0]>} : vector<2x8x8xbf16>, vector<2x8x8xbf16>, vector<2x8x8xf32> -> vector<2x8x8xf32>
    "tpu.trace_stop"() : () -> ()
    %14 = vector.broadcast %9 : vector<2x1x8xf32> to vector<2x8x8xf32>
    %15 = arith.addf %13, %14 : vector<2x8x8xf32>
    %cst_10 = arith.constant dense<0xFF800000> : vector<2x8xf32>
    %16 = vector.multi_reduction <maximumf>, %15, %cst_10 [2] : vector<2x8x8xf32> to vector<2x8xf32>
    %17 = vector.shape_cast %16 : vector<2x8xf32> to vector<2x8x1xf32>
    %18 = vector.broadcast %17 : vector<2x8x1xf32> to vector<2x8x8xf32>
    %19 = arith.subf %15, %18 : vector<2x8x8xf32>
    %20 = math.exp %19 : vector<2x8x8xf32>
    %cst_11 = arith.constant dense<0.000000e+00> : vector<2x8xf32>
    %21 = vector.multi_reduction <add>, %20, %cst_11 [2] : vector<2x8x8xf32> to vector<2x8xf32>
    %22 = vector.shape_cast %21 : vector<2x8xf32> to vector<2x8x1xf32>
    %23 = vector.broadcast %22 : vector<2x8x1xf32> to vector<2x8x8xf32>
    %24 = arith.divf %20, %23 : vector<2x8x8xf32>
    %25 = arith.truncf %24 : vector<2x8x8xf32> to vector<2x8x8xbf16>
    "tpu.trace_start"() <{level = 10 : i32, message = "bqk,bkd->bqd"}> : () -> ()
    %cst_12 = arith.constant dense<0.000000e+00> : vector<2x8x8xf32>
    %26 = tpu.matmul %25, %12, %cst_12 {dimension_numbers = #tpu.dot_dimension_numbers<[2], [1], [1], [2], [0, 0, 0, 1, 1, 2], [0], [0]>} : vector<2x8x8xbf16>, vector<2x8x8xbf16>, vector<2x8x8xf32> -> vector<2x8x8xf32>
    "tpu.trace_stop"() : () -> ()
    %c0_13 = arith.constant 0 : index
    %c0_14 = arith.constant 0 : index
    %c0_15 = arith.constant 0 : index
    %27 = vector.load %arg4[%c0_13, %c0_14, %c0_15] : memref<2x8x32xf32, #tpu.memory_space<vmem>>, vector<2x8x8xf32>
    tpu.vector_store %arg4[%c0_13, %c0_14, %c0_15], %26 {strides = array<i32>} : memref<2x8x32xf32, #tpu.memory_space<vmem>>, vector<2x8x8xf32>,
    %28 = vector.extract_strided_slice %8 {offsets = [0, 0, 8], sizes = [2, 8, 8], strides = [1, 1, 1]} : vector<2x8x96xbf16> to vector<2x8x8xbf16>
    %29 = vector.extract_strided_slice %8 {offsets = [0, 0, 40], sizes = [2, 8, 8], strides = [1, 1, 1]} : vector<2x8x96xbf16> to vector<2x8x8xbf16>
    %30 = vector.extract_strided_slice %8 {offsets = [0, 0, 72], sizes = [2, 8, 8], strides = [1, 1, 1]} : vector<2x8x96xbf16> to vector<2x8x8xbf16>
    "tpu.trace_start"() <{level = 10 : i32, message = "bqd,bkd->bqk"}> : () -> ()
    %cst_16 = arith.constant dense<0.000000e+00> : vector<2x8x8xf32>
    %31 = tpu.matmul %28, %29, %cst_16 {dimension_numbers = #tpu.dot_dimension_numbers<[2], [2], [1], [1], [0, 0, 0, 1, 1, 1], [0], [0]>} : vector<2x8x8xbf16>, vector<2x8x8xbf16>, vector<2x8x8xf32> -> vector<2x8x8xf32>
    "tpu.trace_stop"() : () -> ()
    %32 = vector.broadcast %9 : vector<2x1x8xf32> to vector<2x8x8xf32>
    %33 = arith.addf %31, %32 : vector<2x8x8xf32>
    %cst_17 = arith.constant dense<0xFF800000> : vector<2x8xf32>
    %34 = vector.multi_reduction <maximumf>, %33, %cst_17 [2] : vector<2x8x8xf32> to vector<2x8xf32>
    %35 = vector.shape_cast %34 : vector<2x8xf32> to vector<2x8x1xf32>
    %36 = vector.broadcast %35 : vector<2x8x1xf32> to vector<2x8x8xf32>
    %37 = arith.subf %33, %36 : vector<2x8x8xf32>
    %38 = math.exp %37 : vector<2x8x8xf32>
    %cst_18 = arith.constant dense<0.000000e+00> : vector<2x8xf32>
    %39 = vector.multi_reduction <add>, %38, %cst_18 [2] : vector<2x8x8xf32> to vector<2x8xf32>
    %40 = vector.shape_cast %39 : vector<2x8xf32> to vector<2x8x1xf32>
    %41 = vector.broadcast %40 : vector<2x8x1xf32> to vector<2x8x8xf32>
    %42 = arith.divf %38, %41 : vector<2x8x8xf32>
    %43 = arith.truncf %42 : vector<2x8x8xf32> to vector<2x8x8xbf16>
    "tpu.trace_start"() <{level = 10 : i32, message = "bqk,bkd->bqd"}> : () -> ()
    %cst_19 = arith.constant dense<0.000000e+00> : vector<2x8x8xf32>
    %44 = tpu.matmul %43, %30, %cst_19 {dimension_numbers = #tpu.dot_dimension_numbers<[2], [1], [1], [2], [0, 0, 0, 1, 1, 2], [0], [0]>} : vector<2x8x8xbf16>, vector<2x8x8xbf16>, vector<2x8x8xf32> -> vector<2x8x8xf32>
    "tpu.trace_stop"() : () -> ()
    %c0_20 = arith.constant 0 : index
    %c0_21 = arith.constant 0 : index
    %c8 = arith.constant 8 : index
    %45 = vector.load %arg4[%c0_20, %c0_21, %c8] : memref<2x8x32xf32, #tpu.memory_space<vmem>>, vector<2x8x8xf32>
    tpu.vector_store %arg4[%c0_20, %c0_21, %c8], %44 {strides = array<i32>} : memref<2x8x32xf32, #tpu.memory_space<vmem>>, vector<2x8x8xf32>,
    %46 = vector.extract_strided_slice %8 {offsets = [0, 0, 16], sizes = [2, 8, 8], strides = [1, 1, 1]} : vector<2x8x96xbf16> to vector<2x8x8xbf16>
    %47 = vector.extract_strided_slice %8 {offsets = [0, 0, 48], sizes = [2, 8, 8], strides = [1, 1, 1]} : vector<2x8x96xbf16> to vector<2x8x8xbf16>
    %48 = vector.extract_strided_slice %8 {offsets = [0, 0, 80], sizes = [2, 8, 8], strides = [1, 1, 1]} : vector<2x8x96xbf16> to vector<2x8x8xbf16>
    "tpu.trace_start"() <{level = 10 : i32, message = "bqd,bkd->bqk"}> : () -> ()
    %cst_22 = arith.constant dense<0.000000e+00> : vector<2x8x8xf32>
    %49 = tpu.matmul %46, %47, %cst_22 {dimension_numbers = #tpu.dot_dimension_numbers<[2], [2], [1], [1], [0, 0, 0, 1, 1, 1], [0], [0]>} : vector<2x8x8xbf16>, vector<2x8x8xbf16>, vector<2x8x8xf32> -> vector<2x8x8xf32>
    "tpu.trace_stop"() : () -> ()
    %50 = vector.broadcast %9 : vector<2x1x8xf32> to vector<2x8x8xf32>
    %51 = arith.addf %49, %50 : vector<2x8x8xf32>
    %cst_23 = arith.constant dense<0xFF800000> : vector<2x8xf32>
    %52 = vector.multi_reduction <maximumf>, %51, %cst_23 [2] : vector<2x8x8xf32> to vector<2x8xf32>
    %53 = vector.shape_cast %52 : vector<2x8xf32> to vector<2x8x1xf32>
    %54 = vector.broadcast %53 : vector<2x8x1xf32> to vector<2x8x8xf32>
    %55 = arith.subf %51, %54 : vector<2x8x8xf32>
    %56 = math.exp %55 : vector<2x8x8xf32>
    %cst_24 = arith.constant dense<0.000000e+00> : vector<2x8xf32>
    %57 = vector.multi_reduction <add>, %56, %cst_24 [2] : vector<2x8x8xf32> to vector<2x8xf32>
    %58 = vector.shape_cast %57 : vector<2x8xf32> to vector<2x8x1xf32>
    %59 = vector.broadcast %58 : vector<2x8x1xf32> to vector<2x8x8xf32>
    %60 = arith.divf %56, %59 : vector<2x8x8xf32>
    %61 = arith.truncf %60 : vector<2x8x8xf32> to vector<2x8x8xbf16>
    "tpu.trace_start"() <{level = 10 : i32, message = "bqk,bkd->bqd"}> : () -> ()
    %cst_25 = arith.constant dense<0.000000e+00> : vector<2x8x8xf32>
    %62 = tpu.matmul %61, %48, %cst_25 {dimension_numbers = #tpu.dot_dimension_numbers<[2], [1], [1], [2], [0, 0, 0, 1, 1, 2], [0], [0]>} : vector<2x8x8xbf16>, vector<2x8x8xbf16>, vector<2x8x8xf32> -> vector<2x8x8xf32>
    "tpu.trace_stop"() : () -> ()
    %c0_26 = arith.constant 0 : index
    %c0_27 = arith.constant 0 : index
    %c16 = arith.constant 16 : index
    %63 = vector.load %arg4[%c0_26, %c0_27, %c16] : memref<2x8x32xf32, #tpu.memory_space<vmem>>, vector<2x8x8xf32>
    tpu.vector_store %arg4[%c0_26, %c0_27, %c16], %62 {strides = array<i32>} : memref<2x8x32xf32, #tpu.memory_space<vmem>>, vector<2x8x8xf32>,
    %64 = vector.extract_strided_slice %8 {offsets = [0, 0, 24], sizes = [2, 8, 8], strides = [1, 1, 1]} : vector<2x8x96xbf16> to vector<2x8x8xbf16>
    %65 = vector.extract_strided_slice %8 {offsets = [0, 0, 56], sizes = [2, 8, 8], strides = [1, 1, 1]} : vector<2x8x96xbf16> to vector<2x8x8xbf16>
    %66 = vector.extract_strided_slice %8 {offsets = [0, 0, 88], sizes = [2, 8, 8], strides = [1, 1, 1]} : vector<2x8x96xbf16> to vector<2x8x8xbf16>
    "tpu.trace_start"() <{level = 10 : i32, message = "bqd,bkd->bqk"}> : () -> ()
    %cst_28 = arith.constant dense<0.000000e+00> : vector<2x8x8xf32>
    %67 = tpu.matmul %64, %65, %cst_28 {dimension_numbers = #tpu.dot_dimension_numbers<[2], [2], [1], [1], [0, 0, 0, 1, 1, 1], [0], [0]>} : vector<2x8x8xbf16>, vector<2x8x8xbf16>, vector<2x8x8xf32> -> vector<2x8x8xf32>
    "tpu.trace_stop"() : () -> ()
    %68 = vector.broadcast %9 : vector<2x1x8xf32> to vector<2x8x8xf32>
    %69 = arith.addf %67, %68 : vector<2x8x8xf32>
    %cst_29 = arith.constant dense<0xFF800000> : vector<2x8xf32>
    %70 = vector.multi_reduction <maximumf>, %69, %cst_29 [2] : vector<2x8x8xf32> to vector<2x8xf32>
    %71 = vector.shape_cast %70 : vector<2x8xf32> to vector<2x8x1xf32>
    %72 = vector.broadcast %71 : vector<2x8x1xf32> to vector<2x8x8xf32>
    %73 = arith.subf %69, %72 : vector<2x8x8xf32>
    %74 = math.exp %73 : vector<2x8x8xf32>
    %cst_30 = arith.constant dense<0.000000e+00> : vector<2x8xf32>
    %75 = vector.multi_reduction <add>, %74, %cst_30 [2] : vector<2x8x8xf32> to vector<2x8xf32>
    %76 = vector.shape_cast %75 : vector<2x8xf32> to vector<2x8x1xf32>
    %77 = vector.broadcast %76 : vector<2x8x1xf32> to vector<2x8x8xf32>
    %78 = arith.divf %74, %77 : vector<2x8x8xf32>
    %79 = arith.truncf %78 : vector<2x8x8xf32> to vector<2x8x8xbf16>
    "tpu.trace_start"() <{level = 10 : i32, message = "bqk,bkd->bqd"}> : () -> ()
    %cst_31 = arith.constant dense<0.000000e+00> : vector<2x8x8xf32>
    %80 = tpu.matmul %79, %66, %cst_31 {dimension_numbers = #tpu.dot_dimension_numbers<[2], [1], [1], [2], [0, 0, 0, 1, 1, 2], [0], [0]>} : vector<2x8x8xbf16>, vector<2x8x8xbf16>, vector<2x8x8xf32> -> vector<2x8x8xf32>
    "tpu.trace_stop"() : () -> ()
    %c0_32 = arith.constant 0 : index
    %c0_33 = arith.constant 0 : index
    %c24 = arith.constant 24 : index
    %81 = vector.load %arg4[%c0_32, %c0_33, %c24] : memref<2x8x32xf32, #tpu.memory_space<vmem>>, vector<2x8x8xf32>
    tpu.vector_store %arg4[%c0_32, %c0_33, %c24], %80 {strides = array<i32>} : memref<2x8x32xf32, #tpu.memory_space<vmem>>, vector<2x8x8xf32>,
    return
  }
}

</mosaic_0001>

<llo_original>
// kernel: tpu_custom_call.1
$region0: #{tpu_custom_call.1}
  #allocation0 [shape = 'u32[]', space=smem, size = 0x4, offset = 0x4, fixed_abs, tag = 'smem constant byte address 0x4 - core index']
  #allocation1 [shape = 'u32[144,128]{1,0:T(1,128)}', space=vmem, size = 0x12000, scoped, tag = 'internal scratch']
  %s0 = inlined_call_operand.hbm [shape: bf16[2,8,32], index: 0, kind: input, shape index: {}]
  %s1 = inlined_call_operand.vmem [shape: f32[2,1,8], index: 1, kind: input, shape index: {}]
  %s2 = inlined_call_operand.hbm [shape: bf16[32,96], index: 2, kind: input, shape index: {}]
  %s3 = inlined_call_operand.vmem [shape: f32[1,96], index: 3, kind: input, shape index: {}]
  %s4 = inlined_call_operand.hbm [shape: f32[2,8,32], index: 4, kind: output, shape index: {}]
  %s5 = sld [smem:[#allocation0]]
  $region34: #{tpu_custom_call.1} parent=0
    _
  %s7 = ssub.s32 1, %s5
  %s8 = scalar_select 0, %s7, %s5
  $region1: #{tpu_custom_call.1} parent=0
    #allocation2 [shape = 'u8[4096]{0}', space=vmem, size = 0x1000, scoped, tag = 'input window, operand 0, single buffered']
    #allocation3 [shape = 's32[1]{0}', space=sflag, size = 0x4, scoped, tag = 'scoped memory for tpu_custom_call.1']
    #allocation4 [shape = 's32[1]{0}', space=sflag, size = 0x4, scoped, tag = 'scoped memory for tpu_custom_call.1']
    #allocation5 [shape = 'u8[8192]{0}', space=vmem, size = 0x2000, scoped, tag = 'input window, operand 2, single buffered']
    #allocation6 [shape = 's32[1]{0}', space=sflag, size = 0x4, scoped, tag = 'scoped memory for tpu_custom_call.1']
    #allocation7 [shape = 'u8[8192]{0}', space=vmem, size = 0x2000, scoped, tag = 'output window, operand 0, single buffered']
    %9 = vsyncpa [#allocation3], 0
    %10 = vsyncpa [#allocation6], 0
    %11 = vsyncpa [#allocation4], 0
    // Predicated region
    $region2: #{tpu_custom_call.1} parent=1 // pred_check
      _
    $region3: #{tpu_custom_call.1} parent=1 // pred_check_branch
      %13 = sbr.rel (0) target = $region5
    $region4: #{tpu_custom_call.1} parent=1 // pred_region
      %s15 = ssub.s32 128, 128
      %16 = vsyncadd [#allocation3], %s15
      %s17 = sshll.u32 [#allocation2], 4
      %s18 = int_to_ptr.vmem [resolvable:$true] %s17
      %23 = dma.hbm_to_vmem [thread:$0]  %s0, 128, %s18, [#allocation3], 64, 64, 4
    $region5: #{tpu_custom_call.1} parent=1 // pred_fallthru
      _
    // Predicated region
    $region6: #{tpu_custom_call.1} parent=1 // pred_check
      _
    $region7: #{tpu_custom_call.1} parent=1 // pred_check_branch
      %25 = sbr.rel (0) target = $region9
    $region8: #{tpu_custom_call.1} parent=1 // pred_region
      _
    $region9: #{tpu_custom_call.1} parent=1 // pred_fallthru
      _
    // Predicated region
    $region10: #{tpu_custom_call.1} parent=1 // pred_check
      _
    $region11: #{tpu_custom_call.1} parent=1 // pred_check_branch
      %27 = sbr.rel (0) target = $region13
    $region12: #{tpu_custom_call.1} parent=1 // pred_region
      %s29 = ssub.s32 256, 256
      %30 = vsyncadd [#allocation6], %s29
      %s31 = sshll.u32 [#allocation5], 4
      %s32 = int_to_ptr.vmem [resolvable:$true] %s31
      %37 = dma.hbm_to_vmem [thread:$0]  %s2, 256, %s32, [#allocation6], 64, 64, 4
    $region13: #{tpu_custom_call.1} parent=1 // pred_fallthru
      _
    // Predicated region
    $region14: #{tpu_custom_call.1} parent=1 // pred_check
      _
    $region15: #{tpu_custom_call.1} parent=1 // pred_check_branch
      %39 = sbr.rel (0) target = $region17
    $region16: #{tpu_custom_call.1} parent=1 // pred_region
      _
    $region17: #{tpu_custom_call.1} parent=1 // pred_fallthru
      _
    // Predicated region
    $region18: #{tpu_custom_call.1} parent=1 // pred_check
      _
    $region19: #{tpu_custom_call.1} parent=1 // pred_check_branch
      %41 = sbr.rel (0) target = $region21
    $region20: #{tpu_custom_call.1} parent=1 // pred_region
      %42 = dma.done [#allocation3], 128
    $region21: #{tpu_custom_call.1} parent=1 // pred_fallthru
      _
    // Predicated region
    $region22: #{tpu_custom_call.1} parent=1 // pred_check
      _
    $region23: #{tpu_custom_call.1} parent=1 // pred_check_branch
      %44 = sbr.rel (0) target = $region25
    $region24: #{tpu_custom_call.1} parent=1 // pred_region
      %45 = dma.done [#allocation6], 256
    $region25: #{tpu_custom_call.1} parent=1 // pred_fallthru
      _
    %v47 = vld [vmem:[#allocation2] sm:$0xf]
    %v48 = vld [vmem:[#allocation2 + $0x4] sm:$0xf]
    %v49 = vld [vmem:[#allocation5] sm:$0xf]
    %v50 = vld [vmem:[#allocation5 + $0x4] sm:$0xf]
    %v51 = vld [vmem:[#allocation5 + $0x8] sm:$0xf]
    %v52 = vld [vmem:[#allocation5 + $0xc] sm:$0xf]
    %v53 = vld [vmem:[%s3] sm:$0x1]
    %v55 = vlaneseq
    %v56 = vshrl.u32 %v55, 7
    %v57 = vsub.s32 0, %v56
    %v58 = vrot.slane %v53, %v57
    %v62 = vunpack.c.l.b16 %v47
    %v63 = vunpack.c.l.b16 %v48
    %v64 = vpack.c.b16 %v63, %v62
    %v69 = vunpack.c.l.b16 %v49
    %v70 = vunpack.c.l.b16 %v50
    %v71 = vunpack.c.l.b16 %v51
    %v72 = vunpack.c.l.b16 %v52
    %v73 = vpack.c.b16 %v70, %v69
    %v74 = vpack.c.b16 %v72, %v71
    %vm77 = vcmask 261120
    %v79 = vsel %vm77, %v64, 0
    %81 = vmatprep.subr.bf16.mxu0 0
    %82 = vmatpush1.bf16.msra.mxu0 %v73
    %83 = vmatprep.subr.bf16.mxu0 0
    %84 = vmatpush1.bf16.msra.mxu0 %v74
    %85 = vmatprep.subr.bf16.mxu0 0
    %86 = vmatpush1.bf16.msra.mxu0 0
    %87 = vmatprep.subr.bf16.mxu0 0
    %88 = vmatpush1.bf16.msra.mxu0 0
    %89 = vmatprep.subr.bf16.mxu0 0
    %90 = vmatpush1.bf16.msra.mxu0 0
    %91 = vmatprep.subr.bf16.mxu0 0
    %92 = vmatpush1.bf16.msra.mxu0 0
    %93 = vmatprep.subr.bf16.mxu0 0
    %94 = vmatpush1.bf16.msra.mxu0 0
    %95 = vmatprep.subr.bf16.mxu0 0
    %96 = vmatpush1.bf16.msra.mxu0 0
    %97 = vmatprep.subr.bf16.mxu0 0
    %98 = vmatpush1.bf16.msra.mxu0 0
    %99 = vmatprep.subr.bf16.mxu0 0
    %100 = vmatpush1.bf16.msra.mxu0 0
    %101 = vmatprep.subr.bf16.mxu0 0
    %102 = vmatpush1.bf16.msra.mxu0 0
    %103 = vmatprep.subr.bf16.mxu0 0
    %104 = vmatpush1.bf16.msra.mxu0 0
    %105 = vmatprep.subr.bf16.mxu0 0
    %106 = vmatpush1.bf16.msra.mxu0 0
    %107 = vmatprep.subr.bf16.mxu0 0
    %108 = vmatpush1.bf16.msra.mxu0 0
    %109 = vmatprep.subr.bf16.mxu0 0
    %110 = vmatpush1.bf16.msra.mxu0 0
    %111 = vmatprep.subr.bf16.mxu0 0
    %112 = vmatpush1.bf16.msra.mxu0 0
    %113 = vmatprep.mubr.bf16.mxu0 0
    %114 = vmatmul.mubr.bf16.gmra.mrb[0].mxu0 %v79
    %v115 = vpop.f32.mrb[0].mxu0
    %v116 = vadd.f32 %v58, %v115
    %v117 = vpop.f32.mrb[0].mxu0
    %v118 = vpop.f32.mrb[0].mxu0
    %v119 = vadd.f32 %v58, %v118
    %v120 = vpop.f32.mrb[0].mxu0
    %121 = vdwg.mxu0
    %v122 = vpack.c.bf16 %v119, %v116
    %v124 = vunpack.c.l.b16 %v122
    %v125 = vunpack.c.h.b16 %v122
    %v126 = vpack.c.b16 %v124, %v124
    %v127 = vpack.c.b16 %v125, %v125
    %v128 = vld [vmem:[%s1] sm:$0x1]
    %v129 = vld [vmem:[%s1 + $0x1] sm:$0x1]
    %v132 = vlaneseq
    %v133 = vshrl.u32 %v132, 7
    %v134 = vsub.s32 0, %v133
    %v135 = vrot.slane %v128, %v134
    %v136 = vlaneseq
    %v137 = vshrl.u32 %v136, 7
    %v138 = vsub.s32 0, %v137
    %v139 = vrot.slane %v129, %v138
    %142 = vrot.lane.b32.xlu0 %v126, 96
    %v143 = vpop.permute.xlu0 %142
    %vm144 = vcmask 64512
    %v146 = vsel %vm144, %v126, 0
    %v149 = vsel %vm144, %v143, 0
    %151 = vmatprep.subr.bf16.mxu0 0
    %152 = vmatpush1.bf16.xpose.msra.mxu0 %v149
    %153 = vmatprep.subr.bf16.mxu0 0
    %154 = vmatpush1.bf16.xpose.msra.mxu0 0
    %155 = vmatprep.subr.bf16.mxu0 0
    %156 = vmatpush1.bf16.xpose.msra.mxu0 0
    %157 = vmatprep.subr.bf16.mxu0 0
    %158 = vmatpush1.bf16.xpose.msra.mxu0 0
    %159 = vmatprep.subr.bf16.mxu0 0
    %160 = vmatpush1.bf16.xpose.msra.mxu0 0
    %161 = vmatprep.subr.bf16.mxu0 0
    %162 = vmatpush1.bf16.xpose.msra.mxu0 0
    %163 = vmatprep.subr.bf16.mxu0 0
    %164 = vmatpush1.bf16.xpose.msra.mxu0 0
    %165 = vmatprep.subr.bf16.mxu0 0
    %166 = vmatpush1.bf16.xpose.msra.mxu0 0
    %167 = vmatprep.subr.bf16.mxu0 0
    %168 = vmatpush1.bf16.xpose.msra.mxu0 0
    %169 = vmatprep.subr.bf16.mxu0 0
    %170 = vmatpush1.bf16.xpose.msra.mxu0 0
    %171 = vmatprep.subr.bf16.mxu0 0
    %172 = vmatpush1.bf16.xpose.msra.mxu0 0
    %173 = vmatprep.subr.bf16.mxu0 0
    %174 = vmatpush1.bf16.xpose.msra.mxu0 0
    %175 = vmatprep.subr.bf16.mxu0 0
    %176 = vmatpush1.bf16.xpose.msra.mxu0 0
    %177 = vmatprep.subr.bf16.mxu0 0
    %178 = vmatpush1.bf16.xpose.msra.mxu0 0
    %179 = vmatprep.subr.bf16.mxu0 0
    %180 = vmatpush1.bf16.xpose.msra.mxu0 0
    %181 = vmatprep.subr.bf16.mxu0 0
    %182 = vmatpush1.bf16.xpose.msra.mxu0 0
    %183 = vmatprep.mubr.bf16.mxu0 0
    %184 = vmatmul.mubr.bf16.gmra.mrb[0].mxu0 %v146
    %v185 = vpop.f32.mrb[0].mxu0
    %v186 = vadd.f32 %v135, %v185
    %v187 = vpop.f32.mrb[0].mxu0
    %v188 = vpop.f32.mrb[0].mxu0
    %v189 = vpop.f32.mrb[0].mxu0
    %190 = vdwg.mxu0
    %191 = vrot.lane.b32.xlu0 %v127, 96
    %v192 = vpop.permute.xlu0 %191
    %v194 = vsel %vm144, %v127, 0
    %v197 = vsel %vm144, %v192, 0
    %199 = vmatprep.subr.bf16.mxu0 0
    %200 = vmatpush1.bf16.xpose.msra.mxu0 %v197
    %201 = vmatprep.subr.bf16.mxu0 0
    %202 = vmatpush1.bf16.xpose.msra.mxu0 0
    %203 = vmatprep.subr.bf16.mxu0 0
    %204 = vmatpush1.bf16.xpose.msra.mxu0 0
    %205 = vmatprep.subr.bf16.mxu0 0
    %206 = vmatpush1.bf16.xpose.msra.mxu0 0
    %207 = vmatprep.subr.bf16.mxu0 0
    %208 = vmatpush1.bf16.xpose.msra.mxu0 0
    %209 = vmatprep.subr.bf16.mxu0 0
    %210 = vmatpush1.bf16.xpose.msra.mxu0 0
    %211 = vmatprep.subr.bf16.mxu0 0
    %212 = vmatpush1.bf16.xpose.msra.mxu0 0
    %213 = vmatprep.subr.bf16.mxu0 0
    %214 = vmatpush1.bf16.xpose.msra.mxu0 0
    %215 = vmatprep.subr.bf16.mxu0 0
    %216 = vmatpush1.bf16.xpose.msra.mxu0 0
    %217 = vmatprep.subr.bf16.mxu0 0
    %218 = vmatpush1.bf16.xpose.msra.mxu0 0
    %219 = vmatprep.subr.bf16.mxu0 0
    %220 = vmatpush1.bf16.xpose.msra.mxu0 0
    %221 = vmatprep.subr.bf16.mxu0 0
    %222 = vmatpush1.bf16.xpose.msra.mxu0 0
    %223 = vmatprep.subr.bf16.mxu0 0
    %224 = vmatpush1.bf16.xpose.msra.mxu0 0
    %225 = vmatprep.subr.bf16.mxu0 0
    %226 = vmatpush1.bf16.xpose.msra.mxu0 0
    %227 = vmatprep.subr.bf16.mxu0 0
    %228 = vmatpush1.bf16.xpose.msra.mxu0 0
    %229 = vmatprep.subr.bf16.mxu0 0
    %230 = vmatpush1.bf16.xpose.msra.mxu0 0
    %231 = vmatprep.mubr.bf16.mxu0 0
    %232 = vmatmul.mubr.bf16.gmra.mrb[0].mxu0 %v194
    %v233 = vpop.f32.mrb[0].mxu0
    %v234 = vadd.f32 %v139, %v233
    %v235 = vpop.f32.mrb[0].mxu0
    %v236 = vpop.f32.mrb[0].mxu0
    %v237 = vpop.f32.mrb[0].mxu0
    %238 = vdwg.mxu0
    %v239 = vsel %vm144, %v186, -inf
    %240 = vmax.xlane.f32.xlu0 %v239
    %v241 = vpop.xlane.xlu0 %240
    %v242 = vsel %vm144, %v234, -inf
    %243 = vmax.xlane.f32.xlu0 %v242
    %v244 = vpop.xlane.xlu0 %243
    %v245 = vsub.f32 %v186, %v241
    %v246 = vsub.f32 %v234, %v244
    %v247 = vmul.f32 %v245, 1.442695
    %v248 = vpow.pop %v247
    %v249 = vmul.f32 %v246, 1.442695
    %v250 = vpow.pop %v249
    %v251 = vsel %vm144, %v248, 0.0
    %252 = vadd.xlane.f32.xlu0 %v251
    %v253 = vpop.xlane.xlu0 %252
    %v254 = vsel %vm144, %v250, 0.0
    %255 = vadd.xlane.f32.xlu0 %v254
    %v256 = vpop.xlane.xlu0 %255
    %v257 = vrcp.pop %v253
    %v258 = vmul.f32 %v248, %v257
    %v259 = vrcp.pop %v256
    %v260 = vmul.f32 %v250, %v259
    %v261 = vpack.c.bf16 %v258, %v258
    %v262 = vpack.c.bf16 %v260, %v260
    %263 = vrot.lane.b32.xlu0 %v126, 64
    %v264 = vpop.permute.xlu0 %263
    %v266 = vsel %vm144, %v261, 0
    %vm268 = vcmask 1043456
    %v270 = vsel %vm268, %v264, 0
    %272 = vmatprep.subr.bf16.mxu0 0
    %273 = vmatpush1.bf16.msra.mxu0 %v270
    %274 = vmatprep.subr.bf16.mxu0 0
    %275 = vmatpush1.bf16.msra.mxu0 0
    %276 = vmatprep.subr.bf16.mxu0 0
    %277 = vmatpush1.bf16.msra.mxu0 0
    %278 = vmatprep.subr.bf16.mxu0 0
    %279 = vmatpush1.bf16.msra.mxu0 0
    %280 = vmatprep.subr.bf16.mxu0 0
    %281 = vmatpush1.bf16.msra.mxu0 0
    %282 = vmatprep.subr.bf16.mxu0 0
    %283 = vmatpush1.bf16.msra.mxu0 0
    %284 = vmatprep.subr.bf16.mxu0 0
    %285 = vmatpush1.bf16.msra.mxu0 0
    %286 = vmatprep.subr.bf16.mxu0 0
    %287 = vmatpush1.bf16.msra.mxu0 0
    %288 = vmatprep.subr.bf16.mxu0 0
    %289 = vmatpush1.bf16.msra.mxu0 0
    %290 = vmatprep.subr.bf16.mxu0 0
    %291 = vmatpush1.bf16.msra.mxu0 0
    %292 = vmatprep.subr.bf16.mxu0 0
    %293 = vmatpush1.bf16.msra.mxu0 0
    %294 = vmatprep.subr.bf16.mxu0 0
    %295 = vmatpush1.bf16.msra.mxu0 0
    %296 = vmatprep.subr.bf16.mxu0 0
    %297 = vmatpush1.bf16.msra.mxu0 0
    %298 = vmatprep.subr.bf16.mxu0 0
    %299 = vmatpush1.bf16.msra.mxu0 0
    %300 = vmatprep.subr.bf16.mxu0 0
    %301 = vmatpush1.bf16.msra.mxu0 0
    %302 = vmatprep.subr.bf16.mxu0 0
    %303 = vmatpush1.bf16.msra.mxu0 0
    %304 = vmatprep.mubr.bf16.mxu0 0
    %305 = vmatmul.mubr.bf16.gmra.mrb[0].mxu0 %v266
    %v306 = vpop.f32.mrb[0].mxu0
    %v307 = vadd.f32 0.0, %v306
    %v308 = vpop.f32.mrb[0].mxu0
    %v309 = vpop.f32.mrb[0].mxu0
    %v310 = vpop.f32.mrb[0].mxu0
    %311 = vdwg.mxu0
    %312 = vrot.lane.b32.xlu0 %v127, 64
    %v313 = vpop.permute.xlu0 %312
    %v315 = vsel %vm144, %v262, 0
    %v318 = vsel %vm268, %v313, 0
    %320 = vmatprep.subr.bf16.mxu0 0
    %321 = vmatpush1.bf16.msra.mxu0 %v318
    %322 = vmatprep.subr.bf16.mxu0 0
    %323 = vmatpush1.bf16.msra.mxu0 0
    %324 = vmatprep.subr.bf16.mxu0 0
    %325 = vmatpush1.bf16.msra.mxu0 0
    %326 = vmatprep.subr.bf16.mxu0 0
    %327 = vmatpush1.bf16.msra.mxu0 0
    %328 = vmatprep.subr.bf16.mxu0 0
    %329 = vmatpush1.bf16.msra.mxu0 0
    %330 = vmatprep.subr.bf16.mxu0 0
    %331 = vmatpush1.bf16.msra.mxu0 0
    %332 = vmatprep.subr.bf16.mxu0 0
    %333 = vmatpush1.bf16.msra.mxu0 0
    %334 = vmatprep.subr.bf16.mxu0 0
    %335 = vmatpush1.bf16.msra.mxu0 0
    %336 = vmatprep.subr.bf16.mxu0 0
    %337 = vmatpush1.bf16.msra.mxu0 0
    %338 = vmatprep.subr.bf16.mxu0 0
    %339 = vmatpush1.bf16.msra.mxu0 0
    %340 = vmatprep.subr.bf16.mxu0 0
    %341 = vmatpush1.bf16.msra.mxu0 0
    %342 = vmatprep.subr.bf16.mxu0 0
    %343 = vmatpush1.bf16.msra.mxu0 0
    %344 = vmatprep.subr.bf16.mxu0 0
    %345 = vmatpush1.bf16.msra.mxu0 0
    %346 = vmatprep.subr.bf16.mxu0 0
    %347 = vmatpush1.bf16.msra.mxu0 0
    %348 = vmatprep.subr.bf16.mxu0 0
    %349 = vmatpush1.bf16.msra.mxu0 0
    %350 = vmatprep.subr.bf16.mxu0 0
    %351 = vmatpush1.bf16.msra.mxu0 0
    %352 = vmatprep.mubr.bf16.mxu0 0
    %353 = vmatmul.mubr.bf16.gmra.mrb[0].mxu0 %v315
    %v354 = vpop.f32.mrb[0].mxu0
    %v355 = vadd.f32 0.0, %v354
    %v356 = vpop.f32.mrb[0].mxu0
    %v357 = vpop.f32.mrb[0].mxu0
    %v358 = vpop.f32.mrb[0].mxu0
    %359 = vdwg.mxu0
    %360 = vst.msk [vmem:[#allocation7] sm:$0xff] %vm144, %v307
    %361 = vst.msk [vmem:[#allocation7 + $0x8] sm:$0xff] %vm144, %v355
    %362 = vrot.lane.b32.xlu0 %v126, 120
    %v363 = vpop.permute.xlu0 %362
    %364 = vrot.lane.b32.xlu0 %v126, 88
    %v365 = vpop.permute.xlu0 %364
    %v367 = vsel %vm144, %v363, 0
    %v370 = vsel %vm144, %v365, 0
    %372 = vmatprep.subr.bf16.mxu0 0
    %373 = vmatpush1.bf16.xpose.msra.mxu0 %v370
    %374 = vmatprep.subr.bf16.mxu0 0
    %375 = vmatpush1.bf16.xpose.msra.mxu0 0
    %376 = vmatprep.subr.bf16.mxu0 0
    %377 = vmatpush1.bf16.xpose.msra.mxu0 0
    %378 = vmatprep.subr.bf16.mxu0 0
    %379 = vmatpush1.bf16.xpose.msra.mxu0 0
    %380 = vmatprep.subr.bf16.mxu0 0
    %381 = vmatpush1.bf16.xpose.msra.mxu0 0
    %382 = vmatprep.subr.bf16.mxu0 0
    %383 = vmatpush1.bf16.xpose.msra.mxu0 0
    %384 = vmatprep.subr.bf16.mxu0 0
    %385 = vmatpush1.bf16.xpose.msra.mxu0 0
    %386 = vmatprep.subr.bf16.mxu0 0
    %387 = vmatpush1.bf16.xpose.msra.mxu0 0
    %388 = vmatprep.subr.bf16.mxu0 0
    %389 = vmatpush1.bf16.xpose.msra.mxu0 0
    %390 = vmatprep.subr.bf16.mxu0 0
    %391 = vmatpush1.bf16.xpose.msra.mxu0 0
    %392 = vmatprep.subr.bf16.mxu0 0
    %393 = vmatpush1.bf16.xpose.msra.mxu0 0
    %394 = vmatprep.subr.bf16.mxu0 0
    %395 = vmatpush1.bf16.xpose.msra.mxu0 0
    %396 = vmatprep.subr.bf16.mxu0 0
    %397 = vmatpush1.bf16.xpose.msra.mxu0 0
    %398 = vmatprep.subr.bf16.mxu0 0
    %399 = vmatpush1.bf16.xpose.msra.mxu0 0
    %400 = vmatprep.subr.bf16.mxu0 0
    %401 = vmatpush1.bf16.xpose.msra.mxu0 0
    %402 = vmatprep.subr.bf16.mxu0 0
    %403 = vmatpush1.bf16.xpose.msra.mxu0 0
    %404 = vmatprep.mubr.bf16.mxu0 0
    %405 = vmatmul.mubr.bf16.gmra.mrb[0].mxu0 %v367
    %v406 = vpop.f32.mrb[0].mxu0
    %v407 = vadd.f32 %v135, %v406
    %v408 = vpop.f32.mrb[0].mxu0
    %v409 = vpop.f32.mrb[0].mxu0
    %v410 = vpop.f32.mrb[0].mxu0
    %411 = vdwg.mxu0
    %412 = vrot.lane.b32.xlu0 %v127, 120
    %v413 = vpop.permute.xlu0 %412
    %414 = vrot.lane.b32.xlu0 %v127, 88
    %v415 = vpop.permute.xlu0 %414
    %v417 = vsel %vm144, %v413, 0
    %v420 = vsel %vm144, %v415, 0
    %422 = vmatprep.subr.bf16.mxu0 0
    %423 = vmatpush1.bf16.xpose.msra.mxu0 %v420
    %424 = vmatprep.subr.bf16.mxu0 0
    %425 = vmatpush1.bf16.xpose.msra.mxu0 0
    %426 = vmatprep.subr.bf16.mxu0 0
    %427 = vmatpush1.bf16.xpose.msra.mxu0 0
    %428 = vmatprep.subr.bf16.mxu0 0
    %429 = vmatpush1.bf16.xpose.msra.mxu0 0
    %430 = vmatprep.subr.bf16.mxu0 0
    %431 = vmatpush1.bf16.xpose.msra.mxu0 0
    %432 = vmatprep.subr.bf16.mxu0 0
    %433 = vmatpush1.bf16.xpose.msra.mxu0 0
    %434 = vmatprep.subr.bf16.mxu0 0
    %435 = vmatpush1.bf16.xpose.msra.mxu0 0
    %436 = vmatprep.subr.bf16.mxu0 0
    %437 = vmatpush1.bf16.xpose.msra.mxu0 0
    %438 = vmatprep.subr.bf16.mxu0 0
    %439 = vmatpush1.bf16.xpose.msra.mxu0 0
    %440 = vmatprep.subr.bf16.mxu0 0
    %441 = vmatpush1.bf16.xpose.msra.mxu0 0
    %442 = vmatprep.subr.bf16.mxu0 0
    %443 = vmatpush1.bf16.xpose.msra.mxu0 0
    %444 = vmatprep.subr.bf16.mxu0 0
    %445 = vmatpush1.bf16.xpose.msra.mxu0 0
    %446 = vmatprep.subr.bf16.mxu0 0
    %447 = vmatpush1.bf16.xpose.msra.mxu0 0
    %448 = vmatprep.subr.bf16.mxu0 0
    %449 = vmatpush1.bf16.xpose.msra.mxu0 0
    %450 = vmatprep.subr.bf16.mxu0 0
    %451 = vmatpush1.bf16.xpose.msra.mxu0 0
    %452 = vmatprep.subr.bf16.mxu0 0
    %453 = vmatpush1.bf16.xpose.msra.mxu0 0
    %454 = vmatprep.mubr.bf16.mxu0 0
    %455 = vmatmul.mubr.bf16.gmra.mrb[0].mxu0 %v417
    %v456 = vpop.f32.mrb[0].mxu0
    %v457 = vadd.f32 %v139, %v456
    %v458 = vpop.f32.mrb[0].mxu0
    %v459 = vpop.f32.mrb[0].mxu0
    %v460 = vpop.f32.mrb[0].mxu0
    %461 = vdwg.mxu0
    %v462 = vsel %vm144, %v407, -inf
    %463 = vmax.xlane.f32.xlu0 %v462
    %v464 = vpop.xlane.xlu0 %463
    %v465 = vsel %vm144, %v457, -inf
    %466 = vmax.xlane.f32.xlu0 %v465
    %v467 = vpop.xlane.xlu0 %466
    %v468 = vsub.f32 %v407, %v464
    %v469 = vsub.f32 %v457, %v467
    %v470 = vmul.f32 %v468, 1.442695
    %v471 = vpow.pop %v470
    %v472 = vmul.f32 %v469, 1.442695
    %v473 = vpow.pop %v472
    %v474 = vsel %vm144, %v471, 0.0
    %475 = vadd.xlane.f32.xlu0 %v474
    %v476 = vpop.xlane.xlu0 %475
    %v477 = vsel %vm144, %v473, 0.0
    %478 = vadd.xlane.f32.xlu0 %v477
    %v479 = vpop.xlane.xlu0 %478
    %v480 = vrcp.pop %v476
    %v481 = vmul.f32 %v471, %v480
    %v482 = vrcp.pop %v479
    %v483 = vmul.f32 %v473, %v482
    %v484 = vpack.c.bf16 %v481, %v481
    %v485 = vpack.c.bf16 %v483, %v483
    %486 = vrot.lane.b32.xlu0 %v126, 56
    %v487 = vpop.permute.xlu0 %486
    %v489 = vsel %vm144, %v484, 0
    %v492 = vsel %vm268, %v487, 0
    %494 = vmatprep.subr.bf16.mxu0 0
    %495 = vmatpush1.bf16.msra.mxu0 %v492
    %496 = vmatprep.subr.bf16.mxu0 0
    %497 = vmatpush1.bf16.msra.mxu0 0
    %498 = vmatprep.subr.bf16.mxu0 0
    %499 = vmatpush1.bf16.msra.mxu0 0
    %500 = vmatprep.subr.bf16.mxu0 0
    %501 = vmatpush1.bf16.msra.mxu0 0
    %502 = vmatprep.subr.bf16.mxu0 0
    %503 = vmatpush1.bf16.msra.mxu0 0
    %504 = vmatprep.subr.bf16.mxu0 0
    %505 = vmatpush1.bf16.msra.mxu0 0
    %506 = vmatprep.subr.bf16.mxu0 0
    %507 = vmatpush1.bf16.msra.mxu0 0
    %508 = vmatprep.subr.bf16.mxu0 0
    %509 = vmatpush1.bf16.msra.mxu0 0
    %510 = vmatprep.subr.bf16.mxu0 0
    %511 = vmatpush1.bf16.msra.mxu0 0
    %512 = vmatprep.subr.bf16.mxu0 0
    %513 = vmatpush1.bf16.msra.mxu0 0
    %514 = vmatprep.subr.bf16.mxu0 0
    %515 = vmatpush1.bf16.msra.mxu0 0
    %516 = vmatprep.subr.bf16.mxu0 0
    %517 = vmatpush1.bf16.msra.mxu0 0
    %518 = vmatprep.subr.bf16.mxu0 0
    %519 = vmatpush1.bf16.msra.mxu0 0
    %520 = vmatprep.subr.bf16.mxu0 0
    %521 = vmatpush1.bf16.msra.mxu0 0
    %522 = vmatprep.subr.bf16.mxu0 0
    %523 = vmatpush1.bf16.msra.mxu0 0
    %524 = vmatprep.subr.bf16.mxu0 0
    %525 = vmatpush1.bf16.msra.mxu0 0
    %526 = vmatprep.mubr.bf16.mxu0 0
    %527 = vmatmul.mubr.bf16.gmra.mrb[0].mxu0 %v489
    %v528 = vpop.f32.mrb[0].mxu0
    %v529 = vadd.f32 0.0, %v528
    %v530 = vpop.f32.mrb[0].mxu0
    %v531 = vpop.f32.mrb[0].mxu0
    %v532 = vpop.f32.mrb[0].mxu0
    %533 = vdwg.mxu0
    %534 = vrot.lane.b32.xlu0 %v127, 56
    %v535 = vpop.permute.xlu0 %534
    %v537 = vsel %vm144, %v485, 0
    %v540 = vsel %vm268, %v535, 0
    %542 = vmatprep.subr.bf16.mxu0 0
    %543 = vmatpush1.bf16.msra.mxu0 %v540
    %544 = vmatprep.subr.bf16.mxu0 0
    %545 = vmatpush1.bf16.msra.mxu0 0
    %546 = vmatprep.subr.bf16.mxu0 0
    %547 = vmatpush1.bf16.msra.mxu0 0
    %548 = vmatprep.subr.bf16.mxu0 0
    %549 = vmatpush1.bf16.msra.mxu0 0
    %550 = vmatprep.subr.bf16.mxu0 0
    %551 = vmatpush1.bf16.msra.mxu0 0
    %552 = vmatprep.subr.bf16.mxu0 0
    %553 = vmatpush1.bf16.msra.mxu0 0
    %554 = vmatprep.subr.bf16.mxu0 0
    %555 = vmatpush1.bf16.msra.mxu0 0
    %556 = vmatprep.subr.bf16.mxu0 0
    %557 = vmatpush1.bf16.msra.mxu0 0
    %558 = vmatprep.subr.bf16.mxu0 0
    %559 = vmatpush1.bf16.msra.mxu0 0
    %560 = vmatprep.subr.bf16.mxu0 0
    %561 = vmatpush1.bf16.msra.mxu0 0
    %562 = vmatprep.subr.bf16.mxu0 0
    %563 = vmatpush1.bf16.msra.mxu0 0
    %564 = vmatprep.subr.bf16.mxu0 0
    %565 = vmatpush1.bf16.msra.mxu0 0
    %566 = vmatprep.subr.bf16.mxu0 0
    %567 = vmatpush1.bf16.msra.mxu0 0
    %568 = vmatprep.subr.bf16.mxu0 0
    %569 = vmatpush1.bf16.msra.mxu0 0
    %570 = vmatprep.subr.bf16.mxu0 0
    %571 = vmatpush1.bf16.msra.mxu0 0
    %572 = vmatprep.subr.bf16.mxu0 0
    %573 = vmatpush1.bf16.msra.mxu0 0
    %574 = vmatprep.mubr.bf16.mxu0 0
    %575 = vmatmul.mubr.bf16.gmra.mrb[0].mxu0 %v537
    %v576 = vpop.f32.mrb[0].mxu0
    %v577 = vadd.f32 0.0, %v576
    %v578 = vpop.f32.mrb[0].mxu0
    %v579 = vpop.f32.mrb[0].mxu0
    %v580 = vpop.f32.mrb[0].mxu0
    %581 = vdwg.mxu0
    %584 = vrot.lane.b32.xlu0 %v529, 8
    %v585 = vpop.permute.xlu0 %584
    %586 = vrot.lane.b32.xlu0 %v577, 8
    %v587 = vpop.permute.xlu0 %586
    %vm590 = vcmask 130112
    %591 = vst.msk [vmem:[#allocation7] sm:$0xff] %vm590, %v585
    %592 = vst.msk [vmem:[#allocation7 + $0x8] sm:$0xff] %vm590, %v587
    %593 = vrot.lane.b32.xlu0 %v126, 112
    %v594 = vpop.permute.xlu0 %593
    %595 = vrot.lane.b32.xlu0 %v126, 80
    %v596 = vpop.permute.xlu0 %595
    %v598 = vsel %vm144, %v594, 0
    %v601 = vsel %vm144, %v596, 0
    %603 = vmatprep.subr.bf16.mxu0 0
    %604 = vmatpush1.bf16.xpose.msra.mxu0 %v601
    %605 = vmatprep.subr.bf16.mxu0 0
    %606 = vmatpush1.bf16.xpose.msra.mxu0 0
    %607 = vmatprep.subr.bf16.mxu0 0
    %608 = vmatpush1.bf16.xpose.msra.mxu0 0
    %609 = vmatprep.subr.bf16.mxu0 0
    %610 = vmatpush1.bf16.xpose.msra.mxu0 0
    %611 = vmatprep.subr.bf16.mxu0 0
    %612 = vmatpush1.bf16.xpose.msra.mxu0 0
    %613 = vmatprep.subr.bf16.mxu0 0
    %614 = vmatpush1.bf16.xpose.msra.mxu0 0
    %615 = vmatprep.subr.bf16.mxu0 0
    %616 = vmatpush1.bf16.xpose.msra.mxu0 0
    %617 = vmatprep.subr.bf16.mxu0 0
    %618 = vmatpush1.bf16.xpose.msra.mxu0 0
    %619 = vmatprep.subr.bf16.mxu0 0
    %620 = vmatpush1.bf16.xpose.msra.mxu0 0
    %621 = vmatprep.subr.bf16.mxu0 0
    %622 = vmatpush1.bf16.xpose.msra.mxu0 0
    %623 = vmatprep.subr.bf16.mxu0 0
    %624 = vmatpush1.bf16.xpose.msra.mxu0 0
    %625 = vmatprep.subr.bf16.mxu0 0
    %626 = vmatpush1.bf16.xpose.msra.mxu0 0
    %627 = vmatprep.subr.bf16.mxu0 0
    %628 = vmatpush1.bf16.xpose.msra.mxu0 0
    %629 = vmatprep.subr.bf16.mxu0 0
    %630 = vmatpush1.bf16.xpose.msra.mxu0 0
    %631 = vmatprep.subr.bf16.mxu0 0
    %632 = vmatpush1.bf16.xpose.msra.mxu0 0
    %633 = vmatprep.subr.bf16.mxu0 0
    %634 = vmatpush1.bf16.xpose.msra.mxu0 0
    %635 = vmatprep.mubr.bf16.mxu0 0
    %636 = vmatmul.mubr.bf16.gmra.mrb[0].mxu0 %v598
    %v637 = vpop.f32.mrb[0].mxu0
    %v638 = vadd.f32 %v135, %v637
    %v639 = vpop.f32.mrb[0].mxu0
    %v640 = vpop.f32.mrb[0].mxu0
    %v641 = vpop.f32.mrb[0].mxu0
    %642 = vdwg.mxu0
    %643 = vrot.lane.b32.xlu0 %v127, 112
    %v644 = vpop.permute.xlu0 %643
    %645 = vrot.lane.b32.xlu0 %v127, 80
    %v646 = vpop.permute.xlu0 %645
    %v648 = vsel %vm144, %v644, 0
    %v651 = vsel %vm144, %v646, 0
    %653 = vmatprep.subr.bf16.mxu0 0
    %654 = vmatpush1.bf16.xpose.msra.mxu0 %v651
    %655 = vmatprep.subr.bf16.mxu0 0
    %656 = vmatpush1.bf16.xpose.msra.mxu0 0
    %657 = vmatprep.subr.bf16.mxu0 0
    %658 = vmatpush1.bf16.xpose.msra.mxu0 0
    %659 = vmatprep.subr.bf16.mxu0 0
    %660 = vmatpush1.bf16.xpose.msra.mxu0 0
    %661 = vmatprep.subr.bf16.mxu0 0
    %662 = vmatpush1.bf16.xpose.msra.mxu0 0
    %663 = vmatprep.subr.bf16.mxu0 0
    %664 = vmatpush1.bf16.xpose.msra.mxu0 0
    %665 = vmatprep.subr.bf16.mxu0 0
    %666 = vmatpush1.bf16.xpose.msra.mxu0 0
    %667 = vmatprep.subr.bf16.mxu0 0
    %668 = vmatpush1.bf16.xpose.msra.mxu0 0
    %669 = vmatprep.subr.bf16.mxu0 0
    %670 = vmatpush1.bf16.xpose.msra.mxu0 0
    %671 = vmatprep.subr.bf16.mxu0 0
    %672 = vmatpush1.bf16.xpose.msra.mxu0 0
    %673 = vmatprep.subr.bf16.mxu0 0
    %674 = vmatpush1.bf16.xpose.msra.mxu0 0
    %675 = vmatprep.subr.bf16.mxu0 0
    %676 = vmatpush1.bf16.xpose.msra.mxu0 0
    %677 = vmatprep.subr.bf16.mxu0 0
    %678 = vmatpush1.bf16.xpose.msra.mxu0 0
    %679 = vmatprep.subr.bf16.mxu0 0
    %680 = vmatpush1.bf16.xpose.msra.mxu0 0
    %681 = vmatprep.subr.bf16.mxu0 0
    %682 = vmatpush1.bf16.xpose.msra.mxu0 0
    %683 = vmatprep.subr.bf16.mxu0 0
    %684 = vmatpush1.bf16.xpose.msra.mxu0 0
    %685 = vmatprep.mubr.bf16.mxu0 0
    %686 = vmatmul.mubr.bf16.gmra.mrb[0].mxu0 %v648
    %v687 = vpop.f32.mrb[0].mxu0
    %v688 = vadd.f32 %v139, %v687
    %v689 = vpop.f32.mrb[0].mxu0
    %v690 = vpop.f32.mrb[0].mxu0
    %v691 = vpop.f32.mrb[0].mxu0
    %692 = vdwg.mxu0
    %v693 = vsel %vm144, %v638, -inf
    %694 = vmax.xlane.f32.xlu0 %v693
    %v695 = vpop.xlane.xlu0 %694
    %v696 = vsel %vm144, %v688, -inf
    %697 = vmax.xlane.f32.xlu0 %v696
    %v698 = vpop.xlane.xlu0 %697
    %v699 = vsub.f32 %v638, %v695
    %v700 = vsub.f32 %v688, %v698
    %v701 = vmul.f32 %v699, 1.442695
    %v702 = vpow.pop %v701
    %v703 = vmul.f32 %v700, 1.442695
    %v704 = vpow.pop %v703
    %v705 = vsel %vm144, %v702, 0.0
    %706 = vadd.xlane.f32.xlu0 %v705
    %v707 = vpop.xlane.xlu0 %706
    %v708 = vsel %vm144, %v704, 0.0
    %709 = vadd.xlane.f32.xlu0 %v708
    %v710 = vpop.xlane.xlu0 %709
    %v711 = vrcp.pop %v707
    %v712 = vmul.f32 %v702, %v711
    %v713 = vrcp.pop %v710
    %v714 = vmul.f32 %v704, %v713
    %v715 = vpack.c.bf16 %v712, %v712
    %v716 = vpack.c.bf16 %v714, %v714
    %717 = vrot.lane.b32.xlu0 %v126, 48
    %v718 = vpop.permute.xlu0 %717
    %v720 = vsel %vm144, %v715, 0
    %v723 = vsel %vm268, %v718, 0
    %725 = vmatprep.subr.bf16.mxu0 0
    %726 = vmatpush1.bf16.msra.mxu0 %v723
    %727 = vmatprep.subr.bf16.mxu0 0
    %728 = vmatpush1.bf16.msra.mxu0 0
    %729 = vmatprep.subr.bf16.mxu0 0
    %730 = vmatpush1.bf16.msra.mxu0 0
    %731 = vmatprep.subr.bf16.mxu0 0
    %732 = vmatpush1.bf16.msra.mxu0 0
    %733 = vmatprep.subr.bf16.mxu0 0
    %734 = vmatpush1.bf16.msra.mxu0 0
    %735 = vmatprep.subr.bf16.mxu0 0
    %736 = vmatpush1.bf16.msra.mxu0 0
    %737 = vmatprep.subr.bf16.mxu0 0
    %738 = vmatpush1.bf16.msra.mxu0 0
    %739 = vmatprep.subr.bf16.mxu0 0
    %740 = vmatpush1.bf16.msra.mxu0 0
    %741 = vmatprep.subr.bf16.mxu0 0
    %742 = vmatpush1.bf16.msra.mxu0 0
    %743 = vmatprep.subr.bf16.mxu0 0
    %744 = vmatpush1.bf16.msra.mxu0 0
    %745 = vmatprep.subr.bf16.mxu0 0
    %746 = vmatpush1.bf16.msra.mxu0 0
    %747 = vmatprep.subr.bf16.mxu0 0
    %748 = vmatpush1.bf16.msra.mxu0 0
    %749 = vmatprep.subr.bf16.mxu0 0
    %750 = vmatpush1.bf16.msra.mxu0 0
    %751 = vmatprep.subr.bf16.mxu0 0
    %752 = vmatpush1.bf16.msra.mxu0 0
    %753 = vmatprep.subr.bf16.mxu0 0
    %754 = vmatpush1.bf16.msra.mxu0 0
    %755 = vmatprep.subr.bf16.mxu0 0
    %756 = vmatpush1.bf16.msra.mxu0 0
    %757 = vmatprep.mubr.bf16.mxu0 0
    %758 = vmatmul.mubr.bf16.gmra.mrb[0].mxu0 %v720
    %v759 = vpop.f32.mrb[0].mxu0
    %v760 = vadd.f32 0.0, %v759
    %v761 = vpop.f32.mrb[0].mxu0
    %v762 = vpop.f32.mrb[0].mxu0
    %v763 = vpop.f32.mrb[0].mxu0
    %764 = vdwg.mxu0
    %765 = vrot.lane.b32.xlu0 %v127, 48
    %v766 = vpop.permute.xlu0 %765
    %v768 = vsel %vm144, %v716, 0
    %v771 = vsel %vm268, %v766, 0
    %773 = vmatprep.subr.bf16.mxu0 0
    %774 = vmatpush1.bf16.msra.mxu0 %v771
    %775 = vmatprep.subr.bf16.mxu0 0
    %776 = vmatpush1.bf16.msra.mxu0 0
    %777 = vmatprep.subr.bf16.mxu0 0
    %778 = vmatpush1.bf16.msra.mxu0 0
    %779 = vmatprep.subr.bf16.mxu0 0
    %780 = vmatpush1.bf16.msra.mxu0 0
    %781 = vmatprep.subr.bf16.mxu0 0
    %782 = vmatpush1.bf16.msra.mxu0 0
    %783 = vmatprep.subr.bf16.mxu0 0
    %784 = vmatpush1.bf16.msra.mxu0 0
    %785 = vmatprep.subr.bf16.mxu0 0
    %786 = vmatpush1.bf16.msra.mxu0 0
    %787 = vmatprep.subr.bf16.mxu0 0
    %788 = vmatpush1.bf16.msra.mxu0 0
    %789 = vmatprep.subr.bf16.mxu0 0
    %790 = vmatpush1.bf16.msra.mxu0 0
    %791 = vmatprep.subr.bf16.mxu0 0
    %792 = vmatpush1.bf16.msra.mxu0 0
    %793 = vmatprep.subr.bf16.mxu0 0
    %794 = vmatpush1.bf16.msra.mxu0 0
    %795 = vmatprep.subr.bf16.mxu0 0
    %796 = vmatpush1.bf16.msra.mxu0 0
    %797 = vmatprep.subr.bf16.mxu0 0
    %798 = vmatpush1.bf16.msra.mxu0 0
    %799 = vmatprep.subr.bf16.mxu0 0
    %800 = vmatpush1.bf16.msra.mxu0 0
    %801 = vmatprep.subr.bf16.mxu0 0
    %802 = vmatpush1.bf16.msra.mxu0 0
    %803 = vmatprep.subr.bf16.mxu0 0
    %804 = vmatpush1.bf16.msra.mxu0 0
    %805 = vmatprep.mubr.bf16.mxu0 0
    %806 = vmatmul.mubr.bf16.gmra.mrb[0].mxu0 %v768
    %v807 = vpop.f32.mrb[0].mxu0
    %v808 = vadd.f32 0.0, %v807
    %v809 = vpop.f32.mrb[0].mxu0
    %v810 = vpop.f32.mrb[0].mxu0
    %v811 = vpop.f32.mrb[0].mxu0
    %812 = vdwg.mxu0
    %815 = vrot.lane.b32.xlu0 %v760, 16
    %v816 = vpop.permute.xlu0 %815
    %817 = vrot.lane.b32.xlu0 %v808, 16
    %v818 = vpop.permute.xlu0 %817
    %vm821 = vcmask 195712
    %822 = vst.msk [vmem:[#allocation7] sm:$0xff] %vm821, %v816
    %823 = vst.msk [vmem:[#allocation7 + $0x8] sm:$0xff] %vm821, %v818
    %824 = vrot.lane.b32.xlu0 %v126, 104
    %v825 = vpop.permute.xlu0 %824
    %826 = vrot.lane.b32.xlu0 %v126, 72
    %v827 = vpop.permute.xlu0 %826
    %v829 = vsel %vm144, %v825, 0
    %v832 = vsel %vm144, %v827, 0
    %834 = vmatprep.subr.bf16.mxu0 0
    %835 = vmatpush1.bf16.xpose.msra.mxu0 %v832
    %836 = vmatprep.subr.bf16.mxu0 0
    %837 = vmatpush1.bf16.xpose.msra.mxu0 0
    %838 = vmatprep.subr.bf16.mxu0 0
    %839 = vmatpush1.bf16.xpose.msra.mxu0 0
    %840 = vmatprep.subr.bf16.mxu0 0
    %841 = vmatpush1.bf16.xpose.msra.mxu0 0
    %842 = vmatprep.subr.bf16.mxu0 0
    %843 = vmatpush1.bf16.xpose.msra.mxu0 0
    %844 = vmatprep.subr.bf16.mxu0 0
    %845 = vmatpush1.bf16.xpose.msra.mxu0 0
    %846 = vmatprep.subr.bf16.mxu0 0
    %847 = vmatpush1.bf16.xpose.msra.mxu0 0
    %848 = vmatprep.subr.bf16.mxu0 0
    %849 = vmatpush1.bf16.xpose.msra.mxu0 0
    %850 = vmatprep.subr.bf16.mxu0 0
    %851 = vmatpush1.bf16.xpose.msra.mxu0 0
    %852 = vmatprep.subr.bf16.mxu0 0
    %853 = vmatpush1.bf16.xpose.msra.mxu0 0
    %854 = vmatprep.subr.bf16.mxu0 0
    %855 = vmatpush1.bf16.xpose.msra.mxu0 0
    %856 = vmatprep.subr.bf16.mxu0 0
    %857 = vmatpush1.bf16.xpose.msra.mxu0 0
    %858 = vmatprep.subr.bf16.mxu0 0
    %859 = vmatpush1.bf16.xpose.msra.mxu0 0
    %860 = vmatprep.subr.bf16.mxu0 0
    %861 = vmatpush1.bf16.xpose.msra.mxu0 0
    %862 = vmatprep.subr.bf16.mxu0 0
    %863 = vmatpush1.bf16.xpose.msra.mxu0 0
    %864 = vmatprep.subr.bf16.mxu0 0
    %865 = vmatpush1.bf16.xpose.msra.mxu0 0
    %866 = vmatprep.mubr.bf16.mxu0 0
    %867 = vmatmul.mubr.bf16.gmra.mrb[0].mxu0 %v829
    %v868 = vpop.f32.mrb[0].mxu0
    %v869 = vadd.f32 %v135, %v868
    %v870 = vpop.f32.mrb[0].mxu0
    %v871 = vpop.f32.mrb[0].mxu0
    %v872 = vpop.f32.mrb[0].mxu0
    %873 = vdwg.mxu0
    %874 = vrot.lane.b32.xlu0 %v127, 104
    %v875 = vpop.permute.xlu0 %874
    %876 = vrot.lane.b32.xlu0 %v127, 72
    %v877 = vpop.permute.xlu0 %876
    %v879 = vsel %vm144, %v875, 0
    %v882 = vsel %vm144, %v877, 0
    %884 = vmatprep.subr.bf16.mxu0 0
    %885 = vmatpush1.bf16.xpose.msra.mxu0 %v882
    %886 = vmatprep.subr.bf16.mxu0 0
    %887 = vmatpush1.bf16.xpose.msra.mxu0 0
    %888 = vmatprep.subr.bf16.mxu0 0
    %889 = vmatpush1.bf16.xpose.msra.mxu0 0
    %890 = vmatprep.subr.bf16.mxu0 0
    %891 = vmatpush1.bf16.xpose.msra.mxu0 0
    %892 = vmatprep.subr.bf16.mxu0 0
    %893 = vmatpush1.bf16.xpose.msra.mxu0 0
    %894 = vmatprep.subr.bf16.mxu0 0
    %895 = vmatpush1.bf16.xpose.msra.mxu0 0
    %896 = vmatprep.subr.bf16.mxu0 0
    %897 = vmatpush1.bf16.xpose.msra.mxu0 0
    %898 = vmatprep.subr.bf16.mxu0 0
    %899 = vmatpush1.bf16.xpose.msra.mxu0 0
    %900 = vmatprep.subr.bf16.mxu0 0
    %901 = vmatpush1.bf16.xpose.msra.mxu0 0
    %902 = vmatprep.subr.bf16.mxu0 0
    %903 = vmatpush1.bf16.xpose.msra.mxu0 0
    %904 = vmatprep.subr.bf16.mxu0 0
    %905 = vmatpush1.bf16.xpose.msra.mxu0 0
    %906 = vmatprep.subr.bf16.mxu0 0
    %907 = vmatpush1.bf16.xpose.msra.mxu0 0
    %908 = vmatprep.subr.bf16.mxu0 0
    %909 = vmatpush1.bf16.xpose.msra.mxu0 0
    %910 = vmatprep.subr.bf16.mxu0 0
    %911 = vmatpush1.bf16.xpose.msra.mxu0 0
    %912 = vmatprep.subr.bf16.mxu0 0
    %913 = vmatpush1.bf16.xpose.msra.mxu0 0
    %914 = vmatprep.subr.bf16.mxu0 0
    %915 = vmatpush1.bf16.xpose.msra.mxu0 0
    %916 = vmatprep.mubr.bf16.mxu0 0
    %917 = vmatmul.mubr.bf16.gmra.mrb[0].mxu0 %v879
    %v918 = vpop.f32.mrb[0].mxu0
    %v919 = vadd.f32 %v139, %v918
    %v920 = vpop.f32.mrb[0].mxu0
    %v921 = vpop.f32.mrb[0].mxu0
    %v922 = vpop.f32.mrb[0].mxu0
    %923 = vdwg.mxu0
    %v924 = vsel %vm144, %v869, -inf
    %925 = vmax.xlane.f32.xlu0 %v924
    %v926 = vpop.xlane.xlu0 %925
    %v927 = vsel %vm144, %v919, -inf
    %928 = vmax.xlane.f32.xlu0 %v927
    %v929 = vpop.xlane.xlu0 %928
    %v930 = vsub.f32 %v869, %v926
    %v931 = vsub.f32 %v919, %v929
    %v932 = vmul.f32 %v930, 1.442695
    %v933 = vpow.pop %v932
    %v934 = vmul.f32 %v931, 1.442695
    %v935 = vpow.pop %v934
    %v936 = vsel %vm144, %v933, 0.0
    %937 = vadd.xlane.f32.xlu0 %v936
    %v938 = vpop.xlane.xlu0 %937
    %v939 = vsel %vm144, %v935, 0.0
    %940 = vadd.xlane.f32.xlu0 %v939
    %v941 = vpop.xlane.xlu0 %940
    %v942 = vrcp.pop %v938
    %v943 = vmul.f32 %v933, %v942
    %v944 = vrcp.pop %v941
    %v945 = vmul.f32 %v935, %v944
    %v946 = vpack.c.bf16 %v943, %v943
    %v947 = vpack.c.bf16 %v945, %v945
    %948 = vrot.lane.b32.xlu0 %v126, 40
    %v949 = vpop.permute.xlu0 %948
    %v951 = vsel %vm144, %v946, 0
    %v954 = vsel %vm268, %v949, 0
    %956 = vmatprep.subr.bf16.mxu0 0
    %957 = vmatpush1.bf16.msra.mxu0 %v954
    %958 = vmatprep.subr.bf16.mxu0 0
    %959 = vmatpush1.bf16.msra.mxu0 0
    %960 = vmatprep.subr.bf16.mxu0 0
    %961 = vmatpush1.bf16.msra.mxu0 0
    %962 = vmatprep.subr.bf16.mxu0 0
    %963 = vmatpush1.bf16.msra.mxu0 0
    %964 = vmatprep.subr.bf16.mxu0 0
    %965 = vmatpush1.bf16.msra.mxu0 0
    %966 = vmatprep.subr.bf16.mxu0 0
    %967 = vmatpush1.bf16.msra.mxu0 0
    %968 = vmatprep.subr.bf16.mxu0 0
    %969 = vmatpush1.bf16.msra.mxu0 0
    %970 = vmatprep.subr.bf16.mxu0 0
    %971 = vmatpush1.bf16.msra.mxu0 0
    %972 = vmatprep.subr.bf16.mxu0 0
    %973 = vmatpush1.bf16.msra.mxu0 0
    %974 = vmatprep.subr.bf16.mxu0 0
    %975 = vmatpush1.bf16.msra.mxu0 0
    %976 = vmatprep.subr.bf16.mxu0 0
    %977 = vmatpush1.bf16.msra.mxu0 0
    %978 = vmatprep.subr.bf16.mxu0 0
    %979 = vmatpush1.bf16.msra.mxu0 0
    %980 = vmatprep.subr.bf16.mxu0 0
    %981 = vmatpush1.bf16.msra.mxu0 0
    %982 = vmatprep.subr.bf16.mxu0 0
    %983 = vmatpush1.bf16.msra.mxu0 0
    %984 = vmatprep.subr.bf16.mxu0 0
    %985 = vmatpush1.bf16.msra.mxu0 0
    %986 = vmatprep.subr.bf16.mxu0 0
    %987 = vmatpush1.bf16.msra.mxu0 0
    %988 = vmatprep.mubr.bf16.mxu0 0
    %989 = vmatmul.mubr.bf16.gmra.mrb[0].mxu0 %v951
    %v990 = vpop.f32.mrb[0].mxu0
    %v991 = vadd.f32 0.0, %v990
    %v992 = vpop.f32.mrb[0].mxu0
    %v993 = vpop.f32.mrb[0].mxu0
    %v994 = vpop.f32.mrb[0].mxu0
    %995 = vdwg.mxu0
    %996 = vrot.lane.b32.xlu0 %v127, 40
    %v997 = vpop.permute.xlu0 %996
    %v999 = vsel %vm144, %v947, 0
    %v1002 = vsel %vm268, %v997, 0
    %1004 = vmatprep.subr.bf16.mxu0 0
    %1005 = vmatpush1.bf16.msra.mxu0 %v1002
    %1006 = vmatprep.subr.bf16.mxu0 0
    %1007 = vmatpush1.bf16.msra.mxu0 0
    %1008 = vmatprep.subr.bf16.mxu0 0
    %1009 = vmatpush1.bf16.msra.mxu0 0
    %1010 = vmatprep.subr.bf16.mxu0 0
    %1011 = vmatpush1.bf16.msra.mxu0 0
    %1012 = vmatprep.subr.bf16.mxu0 0
    %1013 = vmatpush1.bf16.msra.mxu0 0
    %1014 = vmatprep.subr.bf16.mxu0 0
    %1015 = vmatpush1.bf16.msra.mxu0 0
    %1016 = vmatprep.subr.bf16.mxu0 0
    %1017 = vmatpush1.bf16.msra.mxu0 0
    %1018 = vmatprep.subr.bf16.mxu0 0
    %1019 = vmatpush1.bf16.msra.mxu0 0
    %1020 = vmatprep.subr.bf16.mxu0 0
    %1021 = vmatpush1.bf16.msra.mxu0 0
    %1022 = vmatprep.subr.bf16.mxu0 0
    %1023 = vmatpush1.bf16.msra.mxu0 0
    %1024 = vmatprep.subr.bf16.mxu0 0
    %1025 = vmatpush1.bf16.msra.mxu0 0
    %1026 = vmatprep.subr.bf16.mxu0 0
    %1027 = vmatpush1.bf16.msra.mxu0 0
    %1028 = vmatprep.subr.bf16.mxu0 0
    %1029 = vmatpush1.bf16.msra.mxu0 0
    %1030 = vmatprep.subr.bf16.mxu0 0
    %1031 = vmatpush1.bf16.msra.mxu0 0
    %1032 = vmatprep.subr.bf16.mxu0 0
    %1033 = vmatpush1.bf16.msra.mxu0 0
    %1034 = vmatprep.subr.bf16.mxu0 0
    %1035 = vmatpush1.bf16.msra.mxu0 0
    %1036 = vmatprep.mubr.bf16.mxu0 0
    %1037 = vmatmul.mubr.bf16.gmra.mrb[0].mxu0 %v999
    %v1038 = vpop.f32.mrb[0].mxu0
    %v1039 = vadd.f32 0.0, %v1038
    %v1040 = vpop.f32.mrb[0].mxu0
    %v1041 = vpop.f32.mrb[0].mxu0
    %v1042 = vpop.f32.mrb[0].mxu0
    %1043 = vdwg.mxu0
    %1046 = vrot.lane.b32.xlu0 %v991, 24
    %v1047 = vpop.permute.xlu0 %1046
    %1048 = vrot.lane.b32.xlu0 %v1039, 24
    %v1049 = vpop.permute.xlu0 %1048
    %vm1052 = vcmask 261312
    %1053 = vst.msk [vmem:[#allocation7] sm:$0xff] %vm1052, %v1047
    %1054 = vst.msk [vmem:[#allocation7 + $0x8] sm:$0xff] %vm1052, %v1049
    // Predicated region
    $region26: #{tpu_custom_call.1} parent=1 // pred_check
      _
    $region27: #{tpu_custom_call.1} parent=1 // pred_check_branch
      %1056 = sbr.rel (0) target = $region29
    $region28: #{tpu_custom_call.1} parent=1 // pred_region
      %s1058 = ssub.s32 256, 256
      %1059 = vsyncadd [#allocation4], %s1058
      %s1060 = sshll.u32 [#allocation7], 4
      %s1061 = int_to_ptr.vmem [resolvable:$true] %s1060
      %1066 = dma.vmem_to_hbm [thread:$0]  %s1061, 256, %s4, [#allocation4], 128, 128, 8
    $region29: #{tpu_custom_call.1} parent=1 // pred_fallthru
      _
    // Predicated region
    $region30: #{tpu_custom_call.1} parent=1 // pred_check
      _
    $region31: #{tpu_custom_call.1} parent=1 // pred_check_branch
      %1068 = sbr.rel (0) target = $region33
    $region32: #{tpu_custom_call.1} parent=1 // pred_region
      %1069 = dma.done [#allocation4], 256
    $region33: #{tpu_custom_call.1} parent=1 // pred_fallthru
      _
    %1070 = vsyncpa [#allocation3], 1
    %1071 = vsyncpa [#allocation6], 1
    %1072 = vsyncpa [#allocation4], 1

</llo_original>
